<compile_context>
chip_gen: v7x
topology: tpu7x:2x2x1
jax: 0.10.0
libtpu: 0.0.40
codegen_flags: <defaults>
</compile_context>

<pallas_src>
import functools

import jax
import jax.numpy as jnp
from jax.experimental import pallas as pl
from jax.experimental.pallas import tpu as pltpu

_LANES = 128
_SUBLANES = 8
_DEFAULT_BLOCK_ROWS = 8192          # 8192 x 128 f32 = 4 MiB / input / buffer
_VMEM_LIMIT_BYTES = 32 * 1024 * 1024  # legal on v5e/v6e/v7x; fits 16 MiB bufs
_MIN_PALLAS_NUMEL = 1 << 17         # below this, plain jnp reduce is faster


def _round_up(x, m):
    return ((x + m - 1) // m) * m


def _sublane_tile(dtype):
    """Packed second-minor tile: 8 rows for 32-bit, 16 for 16-bit, 32 for 8-bit."""
    itemsize = jnp.dtype(dtype).itemsize
    return _SUBLANES * max(1, 4 // itemsize)


@functools.lru_cache(maxsize=None)
def _default_num_splits():
    """How many TensorCores a 'parallel' grid axis is sharded across per device.

    v4 / v5p / v7x expose 2 TensorCores per JAX device (megacore-style
    sharding of 'parallel' axes); v5e / v6e have a single TensorCore, where a
    second split only adds an extra grid pass and a duplicate clamped DMA.
    """
    kind = ""
    try:
        kind = jax.devices()[0].device_kind.lower()
    except Exception:
        pass
    if any(tag in kind for tag in ("v7", "7x", "v4", "v5p")):
        return 2
    return 1


def _loss_sum_kernel(t_ref, p_ref, o_ref, *, loss_type, rows, block_rows,
                     blocks_per_split, blocks_total, needs_mask):
    """Per-split partial reduction of |p - t| or (p - t)^2 into an (8,128) block."""
    c = pl.program_id(0)   # split / core index ("parallel")
    i = pl.program_id(1)   # row-block index within the split ("arbitrary")

    @pl.when(i == 0)
    def _():
        o_ref[...] = jnp.zeros_like(o_ref)

    # Cast inside the kernel so bf16/f16 inputs only move half the HBM bytes.
    diff = p_ref[...].astype(jnp.float32) - t_ref[...].astype(jnp.float32)
    if loss_type == "mae":
        val = jnp.abs(diff)
    elif loss_type == "mse":
        val = diff * diff
    else:
        raise ValueError(f"unsupported loss_type: {loss_type}")

    def _accumulate(v):
        # Fold (block_rows, 128) -> (8, 128) with element-wise VPU adds only;
        # the cross-lane reduction happens once, outside the kernel.
        o_ref[...] += jnp.sum(
            v.reshape(block_rows // _SUBLANES, _SUBLANES, _LANES), axis=0)

    if needs_mask:
        blk = c * blocks_per_split + i
        # Only the last real block (possibly partial) and clamped out-of-range
        # blocks of an uneven split need masking; everything else takes the
        # unmasked fast path and stays vld/DMA bound.
        is_boundary = blk >= (blocks_total - 1)

        @pl.when(jnp.logical_not(is_boundary))
        def _():
            _accumulate(val)

        @pl.when(is_boundary)
        def _():
            # Unclamped row ids: a fully out-of-range (clamped re-read) block
            # has every row id >= rows and contributes exactly zero.
            row_ids = blk * block_rows + jax.lax.broadcasted_iota(
                jnp.int32, (block_rows, _LANES), 0)
            _accumulate(jnp.where(row_ids < rows, val, jnp.float32(0.0)))
    else:
        _accumulate(val)


def _pallas_reduce_loss(target, pred, loss_type, *, block_rows=None,
                        num_splits=None, min_pallas_numel=_MIN_PALLAS_NUMEL):
    """Returns sum(|pred - target|) or sum((pred - target)^2) over all elements."""
    if loss_type not in ("mae", "mse"):
        raise ValueError(f"unsupported loss_type: {loss_type}")
    n = target.size
    assert pred.size == n

    # Small-numel fallback: the pallas_call fixed cost dwarfs the HBM traffic.
    if n < max(1, min_pallas_numel):
        d = pred.astype(jnp.float32) - target.astype(jnp.float32)
        return jnp.sum(jnp.abs(d)) if loss_type == "mae" else jnp.sum(d * d)

    if num_splits is None:
        num_splits = _default_num_splits()
    num_splits = max(1, int(num_splits))

    # Packed sublane tile of the *input* dtypes (8 f32 / 16 bf16 / 32 int8).
    tile = max(_sublane_tile(target.dtype), _sublane_tile(pred.dtype))

    t_flat = jnp.ravel(target)
    p_flat = jnp.ravel(pred)

    # Tiny zero pad (< tile*128 elements) only when numel isn't tile-aligned;
    # zeros contribute 0 to both MAE and MSE sums, so the result is unchanged.
    chunk = tile * _LANES
    rem = n % chunk
    if rem:
        pad = chunk - rem
        t_flat = jnp.pad(t_flat, (0, pad))
        p_flat = jnp.pad(p_flat, (0, pad))
    rows = t_flat.shape[0] // _LANES
    t2d = t_flat.reshape(rows, _LANES)
    p2d = p_flat.reshape(rows, _LANES)

    # Block rows: multiple of the packed tile, no larger than needed, and
    # VMEM-safe everywhere given the explicit 32 MiB scoped-VMEM limit below.
    if block_rows is None:
        block_rows = _DEFAULT_BLOCK_ROWS
    block_rows = max(tile, min(int(block_rows), _round_up(rows, tile)))
    block_rows = _round_up(block_rows, tile)

    blocks_total = pl.cdiv(rows, block_rows)
    # Mid-size inputs that fit in fewer blocks than splits: shrink the block so
    # every TensorCore gets real work instead of a clamped fully-masked pass.
    if num_splits > 1 and blocks_total < num_splits:
        block_rows = max(tile, _round_up(pl.cdiv(rows, num_splits), tile))
        blocks_total = pl.cdiv(rows, block_rows)

    blocks_per_split = pl.cdiv(blocks_total, num_splits)
    needs_mask = (rows % block_rows != 0) or (
        blocks_per_split * num_splits != blocks_total)

    def in_map(c, i):
        blk = c * blocks_per_split + i
        # Clamp so an uneven split never issues an out-of-bounds DMA; the
        # in-kernel boundary mask zeroes any re-read data.
        return (jnp.minimum(blk, blocks_total - 1), 0)

    kernel = functools.partial(
        _loss_sum_kernel, loss_type=loss_type, rows=rows,
        block_rows=block_rows, blocks_per_split=blocks_per_split,
        blocks_total=blocks_total, needs_mask=needs_mask)

    in_bytes = n * (jnp.dtype(target.dtype).itemsize
                    + jnp.dtype(pred.dtype).itemsize)
    out_bytes = num_splits * _SUBLANES * _LANES * 4
    cost = pl.CostEstimate(flops=3 * n, transcendentals=0,
                           bytes_accessed=in_bytes + out_bytes)

    partials = pl.pallas_call(
        kernel,
        out_shape=jax.ShapeDtypeStruct((num_splits * _SUBLANES, _LANES),
                                       jnp.float32),
        grid_spec=pltpu.PrefetchScalarGridSpec(
            num_scalar_prefetch=0,
            grid=(num_splits, blocks_per_split),
            in_specs=[
                pl.BlockSpec((block_rows, _LANES), in_map),
                pl.BlockSpec((block_rows, _LANES), in_map),
            ],
            # Output block index ignores i -> resident accumulator across the
            # reduction axis; no VMEM scratch needed.
            out_specs=pl.BlockSpec((_SUBLANES, _LANES), lambda c, i: (c, 0)),
        ),
        compiler_params=pltpu.CompilerParams(
            dimension_semantics=("parallel", "arbitrary"),
            vmem_limit_bytes=_VMEM_LIMIT_BYTES),
        cost_estimate=cost,
    )(t2d, p2d)

    # Tiny final cross-lane reduction (num_splits*8*128 elements) in plain JAX.
    return jnp.sum(partials)


class CalLossPallas:
    """JAX/Pallas port of the PyTorch Cal_loss module (point-loss path)."""

    def __init__(self, loss_type, *, min_pallas_numel=_MIN_PALLAS_NUMEL):
        self.loss_type = loss_type
        self.min_pallas_numel = min_pallas_numel
        self.point_loss_value = None

    def __call__(self, target, pred, input=None, img_name=None, id=None,
                 vein_loss=False, vein_loss_class=None, loss_weights=(1, 1)):
        w_point, w_vein = loss_weights
        numel = target.size
        loss_sum = _pallas_reduce_loss(target, pred, self.loss_type,
                                       min_pallas_numel=self.min_pallas_numel)
        self.point_loss_value = loss_sum / jnp.float32(numel)
        total_loss = jnp.float32(w_point) * self.point_loss_value
        # TODO(synk): vein_loss_class is an arbitrary external module (image
        # cropping / logging / external model); no Pallas equivalent, skipped.
        return total_loss


if __name__ == "__main__":
    key = jax.random.PRNGKey(0)
    k1, k2 = jax.random.split(key)

    # target/pred shaped like a small batch of point-prediction maps (NCHW).
    target = jax.random.normal(k1, (2, 4, 16, 16), dtype=jnp.float32)
    pred = jax.random.normal(k2, (2, 4, 16, 16), dtype=jnp.float32)

    for lt in ("mae", "mse"):
        # min_pallas_numel=0 forces the Pallas path even at this small size.
        mod = CalLossPallas(lt, min_pallas_numel=0)
        out = jax.block_until_ready(mod(target, pred, loss_weights=(1, 1)))
        diff = pred - target
        if lt == "mae":
            ref = jnp.sum(jnp.abs(diff)) / diff.size
        else:
            ref = jnp.sum(diff * diff) / diff.size
        assert jnp.allclose(out, ref, rtol=1e-5, atol=1e-5), (lt, out, ref)

        # Default threshold: same small input takes the jnp fallback path.
        mod_fb = CalLossPallas(lt)
        out_fb = jax.block_until_ready(mod_fb(target, pred, loss_weights=(1, 1)))
        assert jnp.allclose(out_fb, ref, rtol=1e-5, atol=1e-5), (lt, out_fb, ref)

    # Extra coverage of the tiling edge cases, forcing the Pallas path and both
    # split counts so every code path compiles regardless of the local chip.
    # (shape, dtype, block_rows, num_splits)
    cases = [
        ((2, 3, 17, 19), jnp.float32, 8, 1),      # non-lane-aligned -> pad path
        ((2, 3, 17, 19), jnp.float32, 8, 2),      # + 2-way split of tiny input
        ((2, 4, 48, 64), jnp.float32, 64, 2),     # 3 blocks / 2 splits -> clamp+mask
        ((2, 4, 64, 64), jnp.float32, 64, 2),     # 4 blocks / 2 splits -> no mask
        ((2, 4, 40, 64), jnp.float32, 64, 1),     # partial last block, 1 split
        ((2, 4, 40, 64), jnp.float32, 64, 2),     # partial last block + OOB block
        ((2, 4, 32, 32), jnp.bfloat16, None, 2),  # bf16: 16-row packed tile + shrink
        ((4, 4, 128, 128), jnp.float32, None, None),    # natural threshold + auto
        ((4, 4, 1024, 1024), jnp.float32, None, None),  # full 8192-row blocks
        ((2, 4, 1000, 512), jnp.float32, None, None),   # full blocks + masked tail
    ]
    for idx, (shape, dt, br, ns) in enumerate(cases):
        ka, kb = jax.random.split(jax.random.fold_in(key, idx + 1))
        t = jax.random.normal(ka, shape, dtype=jnp.float32).astype(dt)
        p = jax.random.normal(kb, shape, dtype=jnp.float32).astype(dt)
        got = jax.block_until_ready(
            _pallas_reduce_loss(t, p, "mse", block_rows=br, num_splits=ns,
                                min_pallas_numel=0))
        d = p.astype(jnp.float32) - t.astype(jnp.float32)
        want = jnp.sum(d * d)
        assert jnp.allclose(got, want, rtol=1e-4, atol=1e-3), (shape, got, want)

    # bf16 MAE: cast happens inside the kernel (half the HBM bytes read).
    kt, kp = jax.random.split(jax.random.fold_in(key, 99))
    tb = jax.random.normal(kt, (2, 4, 32, 32), dtype=jnp.float32).astype(jnp.bfloat16)
    pb = jax.random.normal(kp, (2, 4, 32, 32), dtype=jnp.float32).astype(jnp.bfloat16)
    got = jax.block_until_ready(
        _pallas_reduce_loss(tb, pb, "mae", min_pallas_numel=0))
    want = jnp.sum(jnp.abs(pb.astype(jnp.float32) - tb.astype(jnp.float32)))
    assert jnp.allclose(got, want, rtol=1e-4, atol=1e-3), (got, want)

    print("KERNEL_OK")
</pallas_src>

<mosaic_0001>
module attributes {stable_mosaic.version = 11 : i64} {
  func.func @_loss_sum_kernel(%arg0: i32, %arg1: i32, %arg2: memref<16x128xf32, #tpu.memory_space<vmem>>, %arg3: memref<16x128xf32, #tpu.memory_space<vmem>>, %arg4: memref<8x128xf32, #tpu.memory_space<vmem>>) attributes {dimension_semantics = [#tpu.dimension_semantics<parallel>, #tpu.dimension_semantics<arbitrary>], iteration_bounds = array<i64: 1, 1>, scalar_prefetch = 0 : i64, scratch_operands = 0 : i64, tpu.core_type = #tpu.core_type<tc>, window_params = [{transform_indices = @transform_0, window_bounds = array<i64: 16, 128>}, {transform_indices = @transform_1, window_bounds = array<i64: 16, 128>}, {transform_indices = @transform_2, window_bounds = array<i64: 8, 128>}]} {
    %c0_i32 = arith.constant 0 : i32
    %0 = arith.cmpi eq, %arg1, %c0_i32 : i32
    %1 = arith.extui %0 : i1 to i32
    %c0_i32_0 = arith.constant 0 : i32
    %2 = arith.cmpi ne, %1, %c0_i32_0 : i32
    scf.if %2 {
      %cst_8 = arith.constant 0.000000e+00 : f32
      %12 = vector.broadcast %cst_8 : f32 to vector<8x128xf32>
      %c0_9 = arith.constant 0 : index
      %c0_10 = arith.constant 0 : index
      %13 = vector.load %arg4[%c0_9, %c0_10] : memref<8x128xf32, #tpu.memory_space<vmem>>, vector<8x128xf32>
      tpu.vector_store %arg4[%c0_9, %c0_10], %12 {strides = array<i32>} : memref<8x128xf32, #tpu.memory_space<vmem>>, vector<8x128xf32>,
    } else {
    }
    %c0 = arith.constant 0 : index
    %c0_1 = arith.constant 0 : index
    %3 = vector.load %arg3[%c0, %c0_1] : memref<16x128xf32, #tpu.memory_space<vmem>>, vector<16x128xf32>
    %c0_2 = arith.constant 0 : index
    %c0_3 = arith.constant 0 : index
    %4 = vector.load %arg2[%c0_2, %c0_3] : memref<16x128xf32, #tpu.memory_space<vmem>>, vector<16x128xf32>
    %5 = arith.subf %3, %4 : vector<16x128xf32>
    %6 = math.absf %5 : vector<16x128xf32>
    %c0_4 = arith.constant 0 : index
    %c0_5 = arith.constant 0 : index
    %7 = vector.load %arg4[%c0_4, %c0_5] : memref<8x128xf32, #tpu.memory_space<vmem>>, vector<8x128xf32>
    %8 = vector.shape_cast %6 : vector<16x128xf32> to vector<2x8x128xf32>
    %cst = arith.constant dense<0.000000e+00> : vector<8x128xf32>
    %9 = vector.multi_reduction <add>, %8, %cst [0] : vector<2x8x128xf32> to vector<8x128xf32>
    %10 = arith.addf %7, %9 : vector<8x128xf32>
    %c0_6 = arith.constant 0 : index
    %c0_7 = arith.constant 0 : index
    %11 = vector.load %arg4[%c0_6, %c0_7] : memref<8x128xf32, #tpu.memory_space<vmem>>, vector<8x128xf32>
    tpu.vector_store %arg4[%c0_6, %c0_7], %10 {strides = array<i32>} : memref<8x128xf32, #tpu.memory_space<vmem>>, vector<8x128xf32>,
    return
  }
  func.func @transform_0(%arg0: i32, %arg1: i32) -> (i32, i32) {
    %c1_i32 = arith.constant 1 : i32
    %0 = arith.muli %arg0, %c1_i32 : i32
    %1 = arith.addi %0, %arg1 : i32
    %c0_i32 = arith.constant 0 : i32
    %2 = arith.minsi %1, %c0_i32 : i32
    %c0_i32_0 = arith.constant 0 : i32
    %c0_i32_1 = arith.constant 0 : i32
    return %2, %c0_i32_0 : i32, i32
  }
  func.func @transform_1(%arg0: i32, %arg1: i32) -> (i32, i32) {
    %c1_i32 = arith.constant 1 : i32
    %0 = arith.muli %arg0, %c1_i32 : i32
    %1 = arith.addi %0, %arg1 : i32
    %c0_i32 = arith.constant 0 : i32
    %2 = arith.minsi %1, %c0_i32 : i32
    %c0_i32_0 = arith.constant 0 : i32
    %c0_i32_1 = arith.constant 0 : i32
    return %2, %c0_i32_0 : i32, i32
  }
  func.func @transform_2(%arg0: i32, %arg1: i32) -> (i32, i32) {
    %c0_i32 = arith.constant 0 : i32
    %c0_i32_0 = arith.constant 0 : i32
    return %arg0, %c0_i32 : i32, i32
  }
}

</mosaic_0001>

<llo_original>
// kernel: tpu_custom_call.1
$region0: #{tpu_custom_call.1}
  #allocation0 [shape = 'u32[]', space=smem, size = 0x4, offset = 0x4, fixed_abs, tag = 'smem constant byte address 0x4 - core index']
  #allocation1 [shape = 'u32[144,128]{1,0:T(1,128)}', space=vmem, size = 0x12000, scoped, tag = 'internal scratch']
  %s0 = inlined_call_operand.hbm [shape: f32[16,128], index: 0, kind: input, shape index: {}]
  %s1 = inlined_call_operand.hbm [shape: f32[16,128], index: 1, kind: input, shape index: {}]
  %s2 = inlined_call_operand.hbm [shape: f32[8,128], index: 2, kind: output, shape index: {}]
  %s3 = sld [smem:[#allocation0]]
  $region30: #{tpu_custom_call.1} parent=0
    _
  %s5 = ssub.s32 1, %s3
  %s6 = scalar_select 0, %s5, %s3
  $region1: #{tpu_custom_call.1} parent=0
    #allocation2 [shape = 'u8[8192]{0}', space=vmem, size = 0x2000, scoped, tag = 'input window, operand 0, single buffered']
    #allocation3 [shape = 's32[1]{0}', space=sflag, size = 0x4, scoped, tag = 'scoped memory for tpu_custom_call.1']
    #allocation4 [shape = 's32[1]{0}', space=sflag, size = 0x4, scoped, tag = 'scoped memory for tpu_custom_call.1']
    #allocation5 [shape = 'u8[8192]{0}', space=vmem, size = 0x2000, scoped, tag = 'input window, operand 1, single buffered']
    #allocation6 [shape = 's32[1]{0}', space=sflag, size = 0x4, scoped, tag = 'scoped memory for tpu_custom_call.1']
    #allocation7 [shape = 'u8[4096]{0}', space=vmem, size = 0x1000, scoped, tag = 'output window, operand 0, single buffered']
    %7 = vsyncpa [#allocation3], 0
    %8 = vsyncpa [#allocation6], 0
    %9 = vsyncpa [#allocation4], 0
    // Predicated region
    $region2: #{tpu_custom_call.1} parent=1 // pred_check
      _
    $region3: #{tpu_custom_call.1} parent=1 // pred_check_branch
      %11 = sbr.rel (0) target = $region5
    $region4: #{tpu_custom_call.1} parent=1 // pred_region
      %s12 = sadd.s32 0, 0
      %p13 = scmp.lt.s32.totalorder %s12, 0
      %s14 = scalar_select %p13, %s12, 0
      %s15 = smul.u32 2, %s14
      %s17 = ssub.s32 256, 256
      %18 = vsyncadd [#allocation3], %s17
      %s19 = smul.addr %s15, 128
      %s20 = scalar_lea.hbm %s0, %s19
      %s21 = sshll.u32 [#allocation2], 4
      %s22 = int_to_ptr.vmem [resolvable:$true] %s21
      %27 = dma.hbm_to_vmem [thread:$0]  %s20, 256, %s22, [#allocation3], 128, 128, 8
    $region5: #{tpu_custom_call.1} parent=1 // pred_fallthru
      _
    // Predicated region
    $region6: #{tpu_custom_call.1} parent=1 // pred_check
      _
    $region7: #{tpu_custom_call.1} parent=1 // pred_check_branch
      %29 = sbr.rel (0) target = $region9
    $region8: #{tpu_custom_call.1} parent=1 // pred_region
      %s30 = sadd.s32 0, 0
      %p31 = scmp.lt.s32.totalorder %s30, 0
      %s32 = scalar_select %p31, %s30, 0
      %s33 = smul.u32 2, %s32
      %s35 = ssub.s32 256, 256
      %36 = vsyncadd [#allocation6], %s35
      %s37 = smul.addr %s33, 128
      %s38 = scalar_lea.hbm %s1, %s37
      %s39 = sshll.u32 [#allocation5], 4
      %s40 = int_to_ptr.vmem [resolvable:$true] %s39
      %45 = dma.hbm_to_vmem [thread:$0]  %s38, 256, %s40, [#allocation6], 128, 128, 8
    $region9: #{tpu_custom_call.1} parent=1 // pred_fallthru
      _
    // Predicated region
    $region10: #{tpu_custom_call.1} parent=1 // pred_check
      _
    $region11: #{tpu_custom_call.1} parent=1 // pred_check_branch
      %47 = sbr.rel (0) target = $region13
    $region12: #{tpu_custom_call.1} parent=1 // pred_region
      %48 = dma.done [#allocation3], 256
    $region13: #{tpu_custom_call.1} parent=1 // pred_fallthru
      _
    // Predicated region
    $region14: #{tpu_custom_call.1} parent=1 // pred_check
      _
    $region15: #{tpu_custom_call.1} parent=1 // pred_check_branch
      %50 = sbr.rel (0) target = $region17
    $region16: #{tpu_custom_call.1} parent=1 // pred_region
      %51 = dma.done [#allocation6], 256
    $region17: #{tpu_custom_call.1} parent=1 // pred_fallthru
      _
    %s52 = sadd.s32 0, 0
    %p53 = scmp.lt.s32.totalorder %s52, 0
    %s54 = scalar_select %p53, %s52, 0
    %s55 = smul.u32 2, %s54
    %s56 = sadd.s32 0, 0
    %p57 = scmp.lt.s32.totalorder %s56, 0
    %s58 = scalar_select %p57, %s56, 0
    %s59 = smul.u32 2, %s58
    %p60 = scmp.eq.s32.totalorder 0, 0
    // Predicated region
    $region18: #{tpu_custom_call.1} parent=1 // pred_check
      %p61 = pneg %p60
    $region19: #{tpu_custom_call.1} parent=1 // pred_check_branch
      %63 = sbr.rel (%p61) target = $region21
    $region20: #{tpu_custom_call.1} parent=1 // pred_region
      %64 = vst [vmem:[#allocation7] sm:$0xff] 0.0
    $region21: #{tpu_custom_call.1} parent=1 // pred_fallthru
      _
    %v65 = vld [vmem:[#allocation5] sm:$0xff]
    %v66 = vld [vmem:[#allocation5 + $0x8] sm:$0xff]
    %v67 = vld [vmem:[#allocation2] sm:$0xff]
    %v68 = vld [vmem:[#allocation2 + $0x8] sm:$0xff]
    %v69 = vsub.f32 %v65, %v67
    %v70 = vsub.f32 %v66, %v68
    %v71 = vand.u32 2147483647, %v69
    %v72 = vand.u32 2147483647, %v70
    %v73 = vld [vmem:[#allocation7] sm:$0xff]
    %v74 = vadd.f32 %v71, %v72
    %v75 = vadd.f32 %v73, %v74
    %76 = vst [vmem:[#allocation7] sm:$0xff] %v75
    // Predicated region
    $region22: #{tpu_custom_call.1} parent=1 // pred_check
      _
    $region23: #{tpu_custom_call.1} parent=1 // pred_check_branch
      %78 = sbr.rel (0) target = $region25
    $region24: #{tpu_custom_call.1} parent=1 // pred_region
      %s80 = ssub.s32 128, 128
      %81 = vsyncadd [#allocation4], %s80
      %s83 = sshll.u32 [#allocation7], 4
      %s84 = int_to_ptr.vmem [resolvable:$true] %s83
      %86 = dma.vmem_to_hbm [thread:$0]  %s84, 128, %s2, [#allocation4]
    $region25: #{tpu_custom_call.1} parent=1 // pred_fallthru
      _
    // Predicated region
    $region26: #{tpu_custom_call.1} parent=1 // pred_check
      _
    $region27: #{tpu_custom_call.1} parent=1 // pred_check_branch
      %88 = sbr.rel (0) target = $region29
    $region28: #{tpu_custom_call.1} parent=1 // pred_region
      %89 = dma.done [#allocation4], 128
    $region29: #{tpu_custom_call.1} parent=1 // pred_fallthru
      _
    %90 = vsyncpa [#allocation3], 1
    %91 = vsyncpa [#allocation6], 1
    %92 = vsyncpa [#allocation4], 1

</llo_original>
